<compile_context>
chip_gen: v7x
topology: tpu7x:2x2x1
jax: 0.10.0
libtpu: 0.0.40
codegen_flags: <defaults>
</compile_context>

<pallas_src>
import functools

import jax
import jax.numpy as jnp
from jax.experimental import pallas as pl
from jax.experimental.pallas import tpu as pltpu


def _residual_kernel(alpha_ref, beta_ref, x_ref, w_ref, b_ref, o_ref, *,
                     hidden, eps, col_tile):
    # x_ref: (TM, H) row tile (input dtype); w_ref: (H, TN) matmul dtype (bf16);
    # b_ref: (1, TN) f32; alpha/beta: (1,) f32 scalars in SMEM; o_ref: (TM, TN).
    x = x_ref[...].astype(jnp.float32)

    # LayerNormalization (matches torch: unbiased std, eps added to std).
    # Single pass: sum and sum-of-squares computed independently (no serialized
    # reduce -> elementwise -> reduce chain through the XLU).
    s = jnp.sum(x, axis=-1, keepdims=True)
    sq = jnp.sum(x * x, axis=-1, keepdims=True)
    mean = s * (1.0 / hidden)
    var_unbiased = jnp.maximum(sq - hidden * mean * mean, 0.0) * (1.0 / (hidden - 1))
    std = jnp.sqrt(var_unbiased)
    # Per-row reciprocal on the (TM, 1) column via the EUP (approx) - effectively free.
    inv = pl.reciprocal(std + eps, approx=True)
    scale = alpha_ref[0] * inv
    normed = (x - mean) * scale + beta_ref[0]

    # new_layer: Linear(H, H) (possibly N-tiled). MXU in the weight's narrow dtype,
    # accumulate in f32.
    y = jnp.dot(normed.astype(w_ref.dtype), w_ref[...],
                preferred_element_type=jnp.float32)

    # Residual slice of x matching this output column tile.
    if col_tile == hidden:
        x_res = x
    else:
        j = pl.program_id(1)
        col0 = pl.multiple_of(j * col_tile, col_tile)
        x_res = x_ref[:, pl.ds(col0, col_tile)].astype(jnp.float32)

    # dropout (eval mode) == identity; residual add in f32.
    o_ref[...] = (x_res + y + b_ref[...]).astype(o_ref.dtype)


def _choose_col_tile(H, w_itemsize, resident_limit_bytes=16 << 20,
                     chunk_bytes=4 << 20):
    """Full H if the weight comfortably fits resident; otherwise an N tile dividing H."""
    if H * H * w_itemsize <= resident_limit_bytes or H % 128 != 0:
        return H
    best = 128
    tn = 128
    while tn < H:
        if H % tn == 0 and H * tn * w_itemsize <= chunk_bytes:
            best = tn
        tn += 128
    return best


def residual_connection(x, w, b, alpha, beta, *, eps=1e-6,
                        matmul_dtype=jnp.bfloat16, row_tile=None, col_tile=None):
    """x: [B, S, H]; w: [H, H] (ideally pre-cast to bf16); b: [H]; alpha, beta: scalars."""
    B, S, H = x.shape
    rows = B * S
    x2 = x.reshape(rows, H)

    # Cast only if the caller didn't already provide narrow weights / f32 bias
    # (prefer pre-casting once outside the hot path).
    w_mm = w if w.dtype == jnp.dtype(matmul_dtype) else w.astype(matmul_dtype)
    b2 = (b if b.dtype == jnp.float32 else b.astype(jnp.float32)).reshape(1, H)
    alpha1 = jnp.asarray(alpha, jnp.float32).reshape(1)
    beta1 = jnp.asarray(beta, jnp.float32).reshape(1)

    itemsize = jnp.dtype(x.dtype).itemsize
    w_itemsize = jnp.dtype(w_mm.dtype).itemsize
    sub = 16 if itemsize == 2 else 8

    # ---- Row tile: H-adaptive, target ~2 MiB per x tile, capped at 2048 rows. ----
    if row_tile is None:
        target_x_tile_bytes = 2 * 1024 * 1024
        tm = max(sub, min(2048, (target_x_tile_bytes // (H * itemsize)) // sub * sub))
    else:
        tm = max(sub, (row_tile // sub) * sub)
    rows_ceil = ((rows + sub - 1) // sub) * sub
    tm = min(tm, rows_ceil)
    # Keep >= 2 row tiles when possible so the 'parallel' axis can span both v7x TCs.
    if rows > sub and pl.cdiv(rows, tm) < 2:
        half = (rows + 1) // 2
        tm = max(sub, ((half + sub - 1) // sub) * sub)
    grid_rows = pl.cdiv(rows, tm)

    # ---- Column (weight N) tile: resident weight for moderate H, tiled for large H. ----
    if col_tile is None:
        tn = _choose_col_tile(H, w_itemsize)
    else:
        assert col_tile == H or (H % col_tile == 0 and col_tile % 128 == 0), \
            "col_tile must equal H or be a multiple of 128 dividing H"
        tn = col_tile
    grid_cols = H // tn
    w_resident = (grid_cols == 1)

    if w_resident:
        # Constant index_map => DMA'd once; single-buffer to halve its VMEM footprint.
        w_spec = pl.BlockSpec((H, tn), lambda i, j: (0, 0), pipeline_mode=pl.Buffered(1))
        b_spec = pl.BlockSpec((1, tn), lambda i, j: (0, 0), pipeline_mode=pl.Buffered(1))
    else:
        w_spec = pl.BlockSpec((H, tn), lambda i, j: (0, j))
        b_spec = pl.BlockSpec((1, tn), lambda i, j: (0, j))

    # ---- Cost estimate (advisory). ----
    w_passes = 1 if w_resident else grid_rows
    cost = pl.CostEstimate(
        flops=2 * rows * H * H,
        transcendentals=2 * rows,  # sqrt + reciprocal per row
        bytes_accessed=2 * rows * H * itemsize + w_passes * H * H * w_itemsize + H * 4,
    )

    # ---- Generation-aware VMEM budget. ----
    x_tile_bytes = tm * H * itemsize
    out_tile_bytes = tm * tn * itemsize
    w_block_bytes = H * tn * w_itemsize
    f32_scratch = 4 * tm * H * 4          # f32 copies of x / normed / y intermediates
    needed = (2 * x_tile_bytes + 2 * out_tile_bytes
              + (1 if w_resident else 2) * w_block_bytes
              + 2 * tn * 4
              + f32_scratch
              + (8 << 20))                # compiler scratch headroom
    try:
        vmem_cap = pltpu.get_tpu_info().vmem_capacity_bytes
    except Exception:
        vmem_cap = 64 << 20               # conservative (v7x per-TC)
    vmem_limit = int(min(int(0.85 * vmem_cap), max(needed, 32 << 20)))

    kernel = functools.partial(_residual_kernel, hidden=H, eps=eps, col_tile=tn)

    out = pl.pallas_call(
        kernel,
        out_shape=jax.ShapeDtypeStruct((rows, H), x.dtype),
        grid_spec=pltpu.PrefetchScalarGridSpec(
            num_scalar_prefetch=0,
            grid=(grid_rows, grid_cols),
            in_specs=[
                pl.BlockSpec(memory_space=pltpu.MemorySpace.SMEM),   # alpha (scalar)
                pl.BlockSpec(memory_space=pltpu.MemorySpace.SMEM),   # beta  (scalar)
                pl.BlockSpec((tm, H), lambda i, j: (i, 0)),          # x row tile
                w_spec,                                              # W (resident or N-tiled)
                b_spec,                                              # bias row (f32)
            ],
            out_specs=pl.BlockSpec((tm, tn), lambda i, j: (i, j)),
        ),
        compiler_params=pltpu.CompilerParams(
            dimension_semantics=("parallel", "arbitrary"),
            vmem_limit_bytes=vmem_limit),
        cost_estimate=cost,
    )(alpha1, beta1, x2, w_mm, b2)

    return out.reshape(B, S, H)


def _reference(x, w, b, alpha, beta, eps=1e-6, matmul_dtype=jnp.bfloat16):
    xf = x.astype(jnp.float32)
    mean = jnp.mean(xf, axis=-1, keepdims=True)
    d = xf - mean
    std = jnp.sqrt(jnp.sum(d * d, axis=-1, keepdims=True) / (xf.shape[-1] - 1))
    normed = alpha * d / (std + eps) + beta
    y = jnp.dot(normed.astype(matmul_dtype), w.astype(matmul_dtype),
                preferred_element_type=jnp.float32)
    return (xf + y + b.astype(jnp.float32)).astype(x.dtype)


if __name__ == "__main__":
    key = jax.random.PRNGKey(0)
    kx, kw, kb = jax.random.split(key, 3)

    def run_case(B, S, H, dtype=jnp.float32, col_tile=None, atol=2e-2, rtol=2e-2):
        x = jax.random.normal(kx, (B, S, H), dtype=jnp.float32).astype(dtype)
        # Deterministic sublayer (Linear(H, H)) parameters.
        w = jax.random.normal(kw, (H, H), dtype=jnp.float32) * (1.0 / (H ** 0.5))
        b = jax.random.normal(kb, (H,), dtype=jnp.float32) * 0.01
        # LayerNormalization params per __init__: alpha = ones(1), bias = zeros(1).
        alpha = jnp.float32(1.0)
        beta = jnp.float32(0.0)

        # Pre-cast the sublayer weight once, outside the hot path (perf guidance).
        w_bf16 = w.astype(jnp.bfloat16)

        out = residual_connection(x, w_bf16, b, alpha, beta, col_tile=col_tile)
        out = jax.block_until_ready(out)
        ref = _reference(x, w, b, alpha, beta)
        assert out.shape == (B, S, H)
        assert out.dtype == x.dtype
        assert jnp.allclose(out.astype(jnp.float32), ref.astype(jnp.float32),
                            atol=atol, rtol=rtol), f"mismatch vs reference ({B},{S},{H},{dtype})"

    # Small case (rows split into >=2 row tiles; resident single-buffered weight).
    run_case(2, 8, 128)
    # Ragged row count: no wrapper pad/slice, ragged final block masked by Pallas.
    run_case(3, 37, 128)
    # Exercise the weight N-tiling path (2-D grid, column-tiled W / bias / output).
    run_case(2, 8, 256, col_tile=128)
    # bf16 I/O path (halved HBM traffic; f32 LN math + f32 matmul accumulation kept).
    run_case(2, 8, 128, dtype=jnp.bfloat16, atol=6e-2, rtol=6e-2)

    print("KERNEL_OK")
</pallas_src>

<mosaic_0001>
module attributes {stable_mosaic.version = 11 : i64} {
  func.func @_residual_kernel(%arg0: i32, %arg1: i32, %arg2: memref<1xf32, #tpu.memory_space<smem>>, %arg3: memref<1xf32, #tpu.memory_space<smem>>, %arg4: memref<8x128xf32, #tpu.memory_space<vmem>>, %arg5: memref<128x128xbf16, #tpu.memory_space<vmem>>, %arg6: memref<1x128xf32, #tpu.memory_space<vmem>>, %arg7: memref<8x128xf32, #tpu.memory_space<vmem>>) attributes {dimension_semantics = [#tpu.dimension_semantics<parallel>, #tpu.dimension_semantics<arbitrary>], iteration_bounds = array<i64: 2, 1>, scalar_prefetch = 0 : i64, scratch_operands = 0 : i64, tpu.core_type = #tpu.core_type<tc>, window_params = [{transform_indices = @transform_0, window_bounds = array<i64: 1>}, {transform_indices = @transform_1, window_bounds = array<i64: 1>}, {transform_indices = @transform_2, window_bounds = array<i64: 8, 128>}, {pipeline_mode = #tpu.pipeline_mode<synchronous>, transform_indices = @transform_3, window_bounds = array<i64: 128, 128>}, {pipeline_mode = #tpu.pipeline_mode<synchronous>, transform_indices = @transform_4, window_bounds = array<i64: 1, 128>}, {transform_indices = @transform_5, window_bounds = array<i64: 8, 128>}]} {
    %c0 = arith.constant 0 : index
    %c0_0 = arith.constant 0 : index
    %0 = vector.load %arg4[%c0, %c0_0] : memref<8x128xf32, #tpu.memory_space<vmem>>, vector<8x128xf32>
    %cst = arith.constant dense<0.000000e+00> : vector<8xf32>
    %1 = vector.multi_reduction <add>, %0, %cst [1] : vector<8x128xf32> to vector<8xf32>
    %2 = vector.shape_cast %1 : vector<8xf32> to vector<8x1xf32>
    %3 = arith.mulf %0, %0 : vector<8x128xf32>
    %cst_1 = arith.constant dense<0.000000e+00> : vector<8xf32>
    %4 = vector.multi_reduction <add>, %3, %cst_1 [1] : vector<8x128xf32> to vector<8xf32>
    %5 = vector.shape_cast %4 : vector<8xf32> to vector<8x1xf32>
    %cst_2 = arith.constant 7.812500e-03 : f32
    %6 = vector.broadcast %cst_2 : f32 to vector<8x1xf32>
    %7 = arith.mulf %2, %6 : vector<8x1xf32>
    %cst_3 = arith.constant 1.280000e+02 : f32
    %8 = vector.broadcast %cst_3 : f32 to vector<8x1xf32>
    %9 = arith.mulf %8, %7 : vector<8x1xf32>
    %10 = arith.mulf %9, %7 : vector<8x1xf32>
    %11 = arith.subf %5, %10 : vector<8x1xf32>
    %cst_4 = arith.constant 0.000000e+00 : f32
    %12 = vector.broadcast %cst_4 : f32 to vector<8x1xf32>
    %13 = arith.maximumf %11, %12 : vector<8x1xf32>
    %cst_5 = arith.constant 0.00787401571 : f32
    %14 = vector.broadcast %cst_5 : f32 to vector<8x1xf32>
    %15 = arith.mulf %13, %14 : vector<8x1xf32>
    %16 = math.sqrt %15 : vector<8x1xf32>
    %cst_6 = arith.constant 9.99999997E-7 : f32
    %17 = vector.broadcast %cst_6 : f32 to vector<8x1xf32>
    %18 = arith.addf %16, %17 : vector<8x1xf32>
    %19 = tpu.reciprocal %18 {approx = true} : vector<8x1xf32> -> vector<8x1xf32>
    %c0_7 = arith.constant 0 : index
    %20 = memref.load %arg2[%c0_7] : memref<1xf32, #tpu.memory_space<smem>>
    %21 = vector.broadcast %20 : f32 to vector<8x1xf32>
    %22 = arith.mulf %21, %19 : vector<8x1xf32>
    %23 = vector.broadcast %7 : vector<8x1xf32> to vector<8x128xf32>
    %24 = arith.subf %0, %23 : vector<8x128xf32>
    %25 = vector.broadcast %22 : vector<8x1xf32> to vector<8x128xf32>
    %26 = arith.mulf %24, %25 : vector<8x128xf32>
    %c0_8 = arith.constant 0 : index
    %27 = memref.load %arg3[%c0_8] : memref<1xf32, #tpu.memory_space<smem>>
    %28 = vector.broadcast %27 : f32 to vector<8x128xf32>
    %29 = arith.addf %26, %28 : vector<8x128xf32>
    %30 = arith.truncf %29 : vector<8x128xf32> to vector<8x128xbf16>
    %c0_9 = arith.constant 0 : index
    %c0_10 = arith.constant 0 : index
    %31 = vector.load %arg5[%c0_9, %c0_10] : memref<128x128xbf16, #tpu.memory_space<vmem>>, vector<128x128xbf16>
    %cst_11 = arith.constant dense<0.000000e+00> : vector<8x128xf32>
    %32 = tpu.matmul %30, %31, %cst_11 {dimension_numbers = #tpu.dot_dimension_numbers<[1], [0], [0], [1], [0, 0, 1, 1], [], []>} : vector<8x128xbf16>, vector<128x128xbf16>, vector<8x128xf32> -> vector<8x128xf32>
    %33 = arith.addf %0, %32 : vector<8x128xf32>
    %c0_12 = arith.constant 0 : index
    %c0_13 = arith.constant 0 : index
    %34 = vector.load %arg6[%c0_12, %c0_13] : memref<1x128xf32, #tpu.memory_space<vmem>>, vector<1x128xf32>
    %35 = vector.broadcast %34 : vector<1x128xf32> to vector<8x128xf32>
    %36 = arith.addf %33, %35 : vector<8x128xf32>
    %c0_14 = arith.constant 0 : index
    %c0_15 = arith.constant 0 : index
    %37 = vector.load %arg7[%c0_14, %c0_15] : memref<8x128xf32, #tpu.memory_space<vmem>>, vector<8x128xf32>
    tpu.vector_store %arg7[%c0_14, %c0_15], %36 {strides = array<i32>} : memref<8x128xf32, #tpu.memory_space<vmem>>, vector<8x128xf32>,
    return
  }
  func.func @transform_0(%arg0: i32, %arg1: i32) -> i32 {
    %c0_i32 = arith.constant 0 : i32
    %c0_i32_0 = arith.constant 0 : i32
    return %c0_i32 : i32
  }
  func.func @transform_1(%arg0: i32, %arg1: i32) -> i32 {
    %c0_i32 = arith.constant 0 : i32
    %c0_i32_0 = arith.constant 0 : i32
    return %c0_i32 : i32
  }
  func.func @transform_2(%arg0: i32, %arg1: i32) -> (i32, i32) {
    %c0_i32 = arith.constant 0 : i32
    %c0_i32_0 = arith.constant 0 : i32
    return %arg0, %c0_i32 : i32, i32
  }
  func.func @transform_3(%arg0: i32, %arg1: i32) -> (i32, i32) {
    %c0_i32 = arith.constant 0 : i32
    %c0_i32_0 = arith.constant 0 : i32
    %c0_i32_1 = arith.constant 0 : i32
    return %c0_i32, %c0_i32_0 : i32, i32
  }
  func.func @transform_4(%arg0: i32, %arg1: i32) -> (i32, i32) {
    %c0_i32 = arith.constant 0 : i32
    %c0_i32_0 = arith.constant 0 : i32
    %c0_i32_1 = arith.constant 0 : i32
    return %c0_i32, %c0_i32_0 : i32, i32
  }
  func.func @transform_5(%arg0: i32, %arg1: i32) -> (i32, i32) {
    %c0_i32 = arith.constant 0 : i32
    return %arg0, %arg1 : i32, i32
  }
}

</mosaic_0001>

<llo_original>
// kernel: tpu_custom_call.1
$region0: #{tpu_custom_call.1}
  #allocation0 [shape = 'u32[]', space=smem, size = 0x4, offset = 0x4, fixed_abs, tag = 'smem constant byte address 0x4 - core index']
  #allocation1 [shape = 'u32[144,128]{1,0:T(1,128)}', space=vmem, size = 0x12000, scoped, tag = 'internal scratch']
  #allocation2 [shape = 'f32[1]{0:T(128)S(6)}', space=smem, size = 0x200, scoped, tag = 'scoped memory for tpu_custom_call.1']
  #allocation3 [shape = 'f32[1]{0:T(128)S(6)}', space=smem, size = 0x200, scoped, tag = 'scoped memory for tpu_custom_call.1']
  %s0 = inlined_call_operand.<no memory space> [shape: f32[1], index: 0, kind: input, shape index: {}]
  %s1 = inlined_call_operand.<no memory space> [shape: f32[1], index: 1, kind: input, shape index: {}]
  %s2 = inlined_call_operand.hbm [shape: f32[16,128], index: 2, kind: input, shape index: {}]
  %s3 = inlined_call_operand.hbm [shape: bf16[128,128], index: 3, kind: input, shape index: {}]
  %s4 = inlined_call_operand.vmem [shape: f32[1,128], index: 4, kind: input, shape index: {}]
  %s5 = inlined_call_operand.hbm [shape: f32[16,128], index: 5, kind: output, shape index: {}]
  %s6 = sld [smem:[#allocation0]]
  $region61: #{tpu_custom_call.1} parent=0
    _
  %s8 = ssub.s32 1, %s6
  %s9 = scalar_select 0, %s8, %s6
  %10 = sst [smem:[#allocation2]] %s0
  %11 = sst [smem:[#allocation3]] %s1
  $region1: #{tpu_custom_call.1} parent=0
    #allocation4 [shape = 'u8[8192]{0}', space=vmem, size = 0x2000, scoped, tag = 'input window, operand 2']
    #allocation5 [shape = 's32[2]{0}', space=sflag, size = 0x8, scoped, tag = 'scoped memory for tpu_custom_call.1']
    #allocation6 [shape = 's32[2]{0}', space=sflag, size = 0x8, scoped, tag = 'scoped memory for tpu_custom_call.1']
    #allocation7 [shape = 'u8[32768]{0}', space=vmem, size = 0x8000, scoped, tag = 'input window, operand 3, single buffered']
    #allocation8 [shape = 's32[1]{0}', space=sflag, size = 0x4, scoped, tag = 'scoped memory for tpu_custom_call.1']
    #allocation9 [shape = 'u8[8192]{0}', space=vmem, size = 0x2000, scoped, tag = 'output window, operand 0']
    %12 = vsyncpa [#allocation5], 0
    %s13 = scalar_lea.sflag [#allocation5], 1
    %14 = vsyncpa %s13, 0
    %15 = vsyncpa [#allocation8], 0
    %16 = vsyncpa [#allocation6], 0
    %s17 = scalar_lea.sflag [#allocation6], 1
    %18 = vsyncpa %s17, 0
    loop: start=0, step=1, limit=4
    $region2: #{tpu_custom_call.1} parent=1 // loop_pre_header
      _
    $region3: #{tpu_custom_call.1} parent=1 // loop_header
      %s20 = sphi 0, %s24
      %p21 = scmp.ge.s32.totalorder %s20, 4
      %s27 = sphi 0, %s39
      %s28 = sphi 0, %s35
      %s29 = sphi 0, %s27
      %s30 = sphi 0, %s28
      %s31 = sphi 0, %s29
      %s32 = sphi 0, %s30
      %s40 = sphi 0, %s40
      %s42 = sphi 0, %s40
      %s43 = sphi 0, %s42
      %s57 = sphi 0, %s43
      %s61 = sphi 0, %s61
      %s63 = sphi 0, %s61
      %s64 = sphi 0, %s63
      %s78 = sphi 0, %s64
      %s84 = sphi 0, %s86
      %s87 = sphi 0, %s84
      %s88 = sphi 0, %s87
      %s104 = sphi 0, %s88
      %s108 = sphi 0, %s108
      %s110 = sphi 0, %s108
      %s111 = sphi 0, %s110
      %s125 = sphi 0, %s111
      %s129 = sphi 0, %s129
      %s131 = sphi 0, %s129
      %s132 = sphi 0, %s131
      %s146 = sphi 0, %s132
      %s154 = sphi 0, %s156
      %s157 = sphi 0, %s154
      %s158 = sphi 0, %s157
      %s174 = sphi 0, %s158
    $region4: #{tpu_custom_call.1} parent=1 // loop_header_branch
      %23 = sbr.rel (%p21) target = $region8
    $region5: #{tpu_custom_call.1} parent=1 // loop_body
      %s25 = ssub.s32 %s20, 1
      %s26 = ssub.s32 %s20, 2
      %s33 = sadd.s32 1, %s28
      %p34 = scmp.ge.s32.totalorder %s33, 1
      %s35 = scalar_select %p34, 0, %s33
      %s36 = sadd.s32 1, %s27
      %s37 = scalar_select %p34, %s36, %s27
      %p38 = scmp.ge.s32.totalorder %s37, 2
      %s39 = scalar_select %p38, 0, %s37
      %s41 = sadd.s32 %s40, 1
      %p44 = scmp.eq.s32.totalorder %s20, 1
      %p45 = scmp.ne.s32.totalorder %s40, %s42
      %p46 = scmp.eq.s32.totalorder %s20, 0
      %p47 = por %p45, %p46
      %p48 = scmp.ne.s32.totalorder %s40, %s42
      %p49 = scmp.eq.s32.totalorder %s25, 1
      %p50 = por %p48, %p49
      %p51 = scmp.ne.s32.totalorder %s42, %s43
      %p52 = scmp.eq.s32.totalorder %s25, 0
      %p53 = por %p51, %p52
      %p54 = scmp.ne.s32.totalorder %s42, %s43
      %p55 = scmp.eq.s32.totalorder %s26, 1
      %p56 = por %p54, %p55
      %p58 = scmp.ne.s32.totalorder %s43, %s57
      %p59 = scmp.eq.s32.totalorder %s26, 0
      %p60 = por %p58, %p59
      %s62 = sadd.s32 %s61, 1
      %p65 = scmp.eq.s32.totalorder %s20, 1
      %p66 = scmp.ne.s32.totalorder %s61, %s63
      %p67 = scmp.eq.s32.totalorder %s20, 0
      %p68 = por %p66, %p67
      %p69 = scmp.ne.s32.totalorder %s61, %s63
      %p70 = scmp.eq.s32.totalorder %s25, 1
      %p71 = por %p69, %p70
      %p72 = scmp.ne.s32.totalorder %s63, %s64
      %p73 = scmp.eq.s32.totalorder %s25, 0
      %p74 = por %p72, %p73
      %p75 = scmp.ne.s32.totalorder %s63, %s64
      %p76 = scmp.eq.s32.totalorder %s26, 1
      %p77 = por %p75, %p76
      %p79 = scmp.ne.s32.totalorder %s64, %s78
      %p80 = scmp.eq.s32.totalorder %s26, 0
      %p81 = por %p79, %p80
      %s82 = ssub.s32 %s27, %s39
      %p83 = scmp.eq.s32.totalorder %s82, 0
      %s85 = sadd.s32 %s84, 1
      %s86 = scalar_select %p83, %s84, %s85
      %p89 = pneg %p83
      %p90 = scmp.eq.s32.totalorder %s20, 1
      %p91 = por %p89, %p90
      %p92 = scmp.ne.s32.totalorder %s84, %s87
      %p93 = scmp.eq.s32.totalorder %s20, 0
      %p94 = por %p92, %p93
      %p95 = scmp.ne.s32.totalorder %s84, %s87
      %p96 = scmp.eq.s32.totalorder %s25, 1
      %p97 = por %p95, %p96
      %p98 = scmp.ne.s32.totalorder %s87, %s88
      %p99 = scmp.eq.s32.totalorder %s25, 0
      %p100 = por %p98, %p99
      %p101 = scmp.ne.s32.totalorder %s87, %s88
      %p102 = scmp.eq.s32.totalorder %s26, 1
      %p103 = por %p101, %p102
      %p105 = scmp.ne.s32.totalorder %s88, %s104
      %p106 = scmp.eq.s32.totalorder %s26, 0
      %p107 = por %p105, %p106
      %s109 = sadd.s32 %s108, 1
      %p112 = scmp.eq.s32.totalorder %s20, 1
      %p113 = scmp.ne.s32.totalorder %s108, %s110
      %p114 = scmp.eq.s32.totalorder %s20, 0
      %p115 = por %p113, %p114
      %p116 = scmp.ne.s32.totalorder %s108, %s110
      %p117 = scmp.eq.s32.totalorder %s25, 1
      %p118 = por %p116, %p117
      %p119 = scmp.ne.s32.totalorder %s110, %s111
      %p120 = scmp.eq.s32.totalorder %s25, 0
      %p121 = por %p119, %p120
      %p122 = scmp.ne.s32.totalorder %s110, %s111
      %p123 = scmp.eq.s32.totalorder %s26, 1
      %p124 = por %p122, %p123
      %p126 = scmp.ne.s32.totalorder %s111, %s125
      %p127 = scmp.eq.s32.totalorder %s26, 0
      %p128 = por %p126, %p127
      %s130 = sadd.s32 %s129, 1
      %p133 = scmp.eq.s32.totalorder %s20, 1
      %p134 = scmp.ne.s32.totalorder %s129, %s131
      %p135 = scmp.eq.s32.totalorder %s20, 0
      %p136 = por %p134, %p135
      %p137 = scmp.ne.s32.totalorder %s129, %s131
      %p138 = scmp.eq.s32.totalorder %s25, 1
      %p139 = por %p137, %p138
      %p140 = scmp.ne.s32.totalorder %s131, %s132
      %p141 = scmp.eq.s32.totalorder %s25, 0
      %p142 = por %p140, %p141
      %p143 = scmp.ne.s32.totalorder %s131, %s132
      %p144 = scmp.eq.s32.totalorder %s26, 1
      %p145 = por %p143, %p144
      %p147 = scmp.ne.s32.totalorder %s132, %s146
      %p148 = scmp.eq.s32.totalorder %s26, 0
      %p149 = por %p147, %p148
      %s150 = ssub.s32 %s27, %s39
      %s151 = ssub.s32 %s28, %s35
      %s152 = sor.u32 %s150, %s151
      %p153 = scmp.eq.s32.totalorder %s152, 0
      %s155 = sadd.s32 %s154, 1
      %s156 = scalar_select %p153, %s154, %s155
      %p159 = pneg %p153
      %p160 = scmp.eq.s32.totalorder %s20, 1
      %p161 = por %p159, %p160
      %p162 = scmp.ne.s32.totalorder %s154, %s157
      %p163 = scmp.eq.s32.totalorder %s20, 0
      %p164 = por %p162, %p163
      %p165 = scmp.ne.s32.totalorder %s154, %s157
      %p166 = scmp.eq.s32.totalorder %s25, 1
      %p167 = por %p165, %p166
      %p168 = scmp.ne.s32.totalorder %s157, %s158
      %p169 = scmp.eq.s32.totalorder %s25, 0
      %p170 = por %p168, %p169
      %p171 = scmp.ne.s32.totalorder %s157, %s158
      %p172 = scmp.eq.s32.totalorder %s26, 1
      %p173 = por %p171, %p172
      %p175 = scmp.ne.s32.totalorder %s158, %s174
      %p176 = scmp.eq.s32.totalorder %s26, 0
      %p177 = por %p175, %p176
      %p178 = scmp.le.s32.totalorder 1, %s20
      %p179 = scmp.lt.s32.totalorder %s20, 3
      %p180 = pnand %p178, %p179
      %p181 = pneg %p180
      // Predicated region
      $region9: #{tpu_custom_call.1} parent=5 // pred_check
        _
      $region10: #{tpu_custom_call.1} parent=5 // pred_check_branch
        %183 = sbr.rel (%p180) target = $region12
      $region11: #{tpu_custom_call.1} parent=5 // pred_region
        %s184 = ssub.s32 %s20, 1
        // Predicated region
        $region13: #{tpu_custom_call.1} parent=11 // pred_check
          %p185 = pneg %p53
        $region14: #{tpu_custom_call.1} parent=11 // pred_check_branch
          %187 = sbr.rel (%p185) target = $region16
        $region15: #{tpu_custom_call.1} parent=11 // pred_region
          _
        $region16: #{tpu_custom_call.1} parent=11 // pred_fallthru
          _
        // Predicated region
        $region17: #{tpu_custom_call.1} parent=11 // pred_check
          %p188 = pneg %p74
        $region18: #{tpu_custom_call.1} parent=11 // pred_check_branch
          %190 = sbr.rel (%p188) target = $region20
        $region19: #{tpu_custom_call.1} parent=11 // pred_region
          _
        $region20: #{tpu_custom_call.1} parent=11 // pred_fallthru
          _
        // Predicated region
        $region21: #{tpu_custom_call.1} parent=11 // pred_check
          %p191 = pneg %p121
        $region22: #{tpu_custom_call.1} parent=11 // pred_check_branch
          %193 = sbr.rel (%p191) target = $region24
        $region23: #{tpu_custom_call.1} parent=11 // pred_region
          %s195 = ssub.s32 1024, 1024
          %196 = vsyncadd [#allocation8], %s195
          %s197 = sshll.u32 [#allocation7], 4
          %s198 = int_to_ptr.vmem [resolvable:$true] %s197
          %203 = dma.hbm_to_vmem [thread:$0]  %s3, 1024, %s198, [#allocation8], 64, 64, 4
        $region24: #{tpu_custom_call.1} parent=11 // pred_fallthru
          _
        // Predicated region
        $region25: #{tpu_custom_call.1} parent=11 // pred_check
          %p204 = pneg %p142
        $region26: #{tpu_custom_call.1} parent=11 // pred_check_branch
          %206 = sbr.rel (%p204) target = $region28
        $region27: #{tpu_custom_call.1} parent=11 // pred_region
          _
        $region28: #{tpu_custom_call.1} parent=11 // pred_fallthru
          _
      $region12: #{tpu_custom_call.1} parent=5 // pred_fallthru
        _
      %p207 = scmp.lt.s32.totalorder %s20, 2
      // Predicated region
      $region29: #{tpu_custom_call.1} parent=5 // pred_check
        %p208 = pneg %p207
      $region30: #{tpu_custom_call.1} parent=5 // pred_check_branch
        %210 = sbr.rel (%p208) target = $region32
      $region31: #{tpu_custom_call.1} parent=5 // pred_region
        // Predicated region
        $region33: #{tpu_custom_call.1} parent=31 // pred_check
          %p211 = pneg %p94
        $region34: #{tpu_custom_call.1} parent=31 // pred_check_branch
          %213 = sbr.rel (%p211) target = $region36
        $region35: #{tpu_custom_call.1} parent=31 // pred_region
          %s214 = sand.u32 %s84, 1
          %s215 = scalar_lea.sflag [#allocation5], %s214
          %s216 = sand.u32 %s84, 1
          %s217 = smul.addr %s216, 8
          %s218 = scalar_lea.vmem [#allocation4], %s217
          %s220 = ssub.s32 128, 128
          %221 = vsyncadd %s215, %s220
          %s222 = smul.addr %s27, 128
          %s223 = scalar_lea.hbm %s2, %s222
          %s225 = sshll.u32 %s218, 4
          %s226 = int_to_ptr.vmem [resolvable:$true] %s225
          %228 = dma.hbm_to_vmem [thread:$0]  %s223, 128, %s226, %s215
        $region36: #{tpu_custom_call.1} parent=31 // pred_fallthru
          _
      $region32: #{tpu_custom_call.1} parent=5 // pred_fallthru
        _
      %p229 = scmp.le.s32.totalorder 1, %s20
      %p230 = scmp.lt.s32.totalorder %s20, 3
      %p231 = pnand %p229, %p230
      %p232 = pneg %p231
      // Predicated region
      $region37: #{tpu_custom_call.1} parent=5 // pred_check
        _
      $region38: #{tpu_custom_call.1} parent=5 // pred_check_branch
        %234 = sbr.rel (%p231) target = $region40
      $region39: #{tpu_custom_call.1} parent=5 // pred_region
        %s235 = ssub.s32 %s20, 1
        %s236 = sand.u32 %s87, 1
        %s237 = scalar_lea.sflag [#allocation5], %s236
        %s238 = sand.u32 %s87, 1
        %s239 = smul.addr %s238, 8
        %s240 = scalar_lea.vmem [#allocation4], %s239
        // Predicated region
        $region41: #{tpu_custom_call.1} parent=39 // pred_check
          %p241 = pneg %p100
        $region42: #{tpu_custom_call.1} parent=39 // pred_check_branch
          %243 = sbr.rel (%p241) target = $region44
        $region43: #{tpu_custom_call.1} parent=39 // pred_region
          %244 = dma.done %s237, 128
        $region44: #{tpu_custom_call.1} parent=39 // pred_fallthru
          _
        // Predicated region
        $region45: #{tpu_custom_call.1} parent=39 // pred_check
          %p245 = pneg %p121
        $region46: #{tpu_custom_call.1} parent=39 // pred_check_branch
          %247 = sbr.rel (%p245) target = $region48
        $region47: #{tpu_custom_call.1} parent=39 // pred_region
          %248 = dma.done [#allocation8], 1024
        $region48: #{tpu_custom_call.1} parent=39 // pred_fallthru
          _
        %p249 = pneg %p53
        %p250 = pneg %p50
        %p251 = pneg %p74
        %p252 = pneg %p71
        %s253 = sand.u32 %s87, 1
        %s254 = scalar_lea.sflag [#allocation5], %s253
        %s255 = sand.u32 %s87, 1
        %s256 = smul.addr %s255, 8
        %s257 = scalar_lea.vmem [#allocation4], %s256
        %p258 = pneg %p100
        %p259 = pneg %p97
        %p260 = pneg %p121
        %p261 = pneg %p118
        %p262 = pneg %p142
        %p263 = pneg %p139
        %p264 = pneg %p170
        %p265 = pneg %p167
        %s266 = sand.u32 %s157, 1
        %s267 = scalar_lea.sflag [#allocation6], %s266
        %s268 = sand.u32 %s157, 1
        %s269 = smul.addr %s268, 8
        %s270 = scalar_lea.vmem [#allocation9], %s269
        %v272 = vld [vmem:[%s240] sm:$0xff]
        %273 = vadd.xlane.f32.xlu0 %v272
        %v274 = vpop.xlane.xlu0 %273
        %v275 = vmul.f32 %v272, %v272
        %276 = vadd.xlane.f32.xlu0 %v275
        %v277 = vpop.xlane.xlu0 %276
        %v278 = vmul.f32 %v274, 0.0078125
        %v279 = vmul.f32 %v278, 128.0
        %v280 = vmul.f32 %v279, %v278
        %v281 = vsub.f32 %v277, %v280
        %v282 = vmax.f32 %v281, 0.0
        %v283 = vmul.f32 %v282, 0.007874016
        %v284 = vrsqrt.pop %v283
        %v285 = vmul.f32 %v283, %v284
        %vm286 = vcmp.eq.f32.partialorder %v283, inf
        %v287 = vsel %vm286, %v283, %v285
        %vm288 = vcmp.eq.f32.partialorder %v283, 0.0
        %v289 = vand.u32 %v283, 2147483648
        %v290 = vsel %vm288, %v289, %v287
        %v291 = vadd.f32 %v290, 1e-06
        %v292 = vrcp.pop %v291
        %s293 = sld [smem:[#allocation2]]
        %v294 = vstv %s293
        %v295 = vmul.f32 %v294, %v292
        %v296 = vsub.f32 %v272, %v278
        %v297 = vmul.f32 %v296, %v295
        %s298 = sld [smem:[#allocation3]]
        %v299 = vstv %s298
        %v300 = vadd.f32 %v297, %v299
        %v301 = vpack.c.bf16 %v300, %v300
        %v302 = vld [vmem:[#allocation7] sm:$0xf]
        %v303 = vld [vmem:[#allocation7 + $0x4] sm:$0xf]
        %v304 = vld [vmem:[#allocation7 + $0x8] sm:$0xf]
        %v305 = vld [vmem:[#allocation7 + $0xc] sm:$0xf]
        %v306 = vld [vmem:[#allocation7 + $0x10] sm:$0xf]
        %v307 = vld [vmem:[#allocation7 + $0x14] sm:$0xf]
        %v308 = vld [vmem:[#allocation7 + $0x18] sm:$0xf]
        %v309 = vld [vmem:[#allocation7 + $0x1c] sm:$0xf]
        %v310 = vld [vmem:[#allocation7 + $0x20] sm:$0xf]
        %v311 = vld [vmem:[#allocation7 + $0x24] sm:$0xf]
        %v312 = vld [vmem:[#allocation7 + $0x28] sm:$0xf]
        %v313 = vld [vmem:[#allocation7 + $0x2c] sm:$0xf]
        %v314 = vld [vmem:[#allocation7 + $0x30] sm:$0xf]
        %v315 = vld [vmem:[#allocation7 + $0x34] sm:$0xf]
        %v316 = vld [vmem:[#allocation7 + $0x38] sm:$0xf]
        %v317 = vld [vmem:[#allocation7 + $0x3c] sm:$0xf]
        %v334 = vunpack.c.l.b16 %v302
        %v335 = vunpack.c.l.b16 %v303
        %v336 = vunpack.c.l.b16 %v304
        %v337 = vunpack.c.l.b16 %v305
        %v338 = vunpack.c.l.b16 %v306
        %v339 = vunpack.c.l.b16 %v307
        %v340 = vunpack.c.l.b16 %v308
        %v341 = vunpack.c.l.b16 %v309
        %v342 = vunpack.c.l.b16 %v310
        %v343 = vunpack.c.l.b16 %v311
        %v344 = vunpack.c.l.b16 %v312
        %v345 = vunpack.c.l.b16 %v313
        %v346 = vunpack.c.l.b16 %v314
        %v347 = vunpack.c.l.b16 %v315
        %v348 = vunpack.c.l.b16 %v316
        %v349 = vunpack.c.l.b16 %v317
        %v350 = vpack.c.b16 %v335, %v334
        %v351 = vpack.c.b16 %v337, %v336
        %v352 = vpack.c.b16 %v339, %v338
        %v353 = vpack.c.b16 %v341, %v340
        %v354 = vpack.c.b16 %v343, %v342
        %v355 = vpack.c.b16 %v345, %v344
        %v356 = vpack.c.b16 %v347, %v346
        %v357 = vpack.c.b16 %v349, %v348
        %366 = vmatprep.subr.bf16.mxu0 0
        %367 = vmatpush1.bf16.msra.mxu0 %v350
        %368 = vmatprep.subr.bf16.mxu0 0
        %369 = vmatpush1.bf16.msra.mxu0 %v351
        %370 = vmatprep.subr.bf16.mxu0 0
        %371 = vmatpush1.bf16.msra.mxu0 %v352
        %372 = vmatprep.subr.bf16.mxu0 0
        %373 = vmatpush1.bf16.msra.mxu0 %v353
        %374 = vmatprep.subr.bf16.mxu0 0
        %375 = vmatpush1.bf16.msra.mxu0 %v354
        %376 = vmatprep.subr.bf16.mxu0 0
        %377 = vmatpush1.bf16.msra.mxu0 %v355
        %378 = vmatprep.subr.bf16.mxu0 0
        %379 = vmatpush1.bf16.msra.mxu0 %v356
        %380 = vmatprep.subr.bf16.mxu0 0
        %381 = vmatpush1.bf16.msra.mxu0 %v357
        %382 = vmatprep.subr.bf16.mxu0 0
        %383 = vmatpush1.bf16.msra.mxu0 0
        %384 = vmatprep.subr.bf16.mxu0 0
        %385 = vmatpush1.bf16.msra.mxu0 0
        %386 = vmatprep.subr.bf16.mxu0 0
        %387 = vmatpush1.bf16.msra.mxu0 0
        %388 = vmatprep.subr.bf16.mxu0 0
        %389 = vmatpush1.bf16.msra.mxu0 0
        %390 = vmatprep.subr.bf16.mxu0 0
        %391 = vmatpush1.bf16.msra.mxu0 0
        %392 = vmatprep.subr.bf16.mxu0 0
        %393 = vmatpush1.bf16.msra.mxu0 0
        %394 = vmatprep.subr.bf16.mxu0 0
        %395 = vmatpush1.bf16.msra.mxu0 0
        %396 = vmatprep.subr.bf16.mxu0 0
        %397 = vmatpush1.bf16.msra.mxu0 0
        %398 = vmatprep.mubr.bf16.mxu0 0
        %399 = vmatmul.mubr.bf16.gmra.mrb[0].mxu0 %v301
        %v400 = vpop.f32.mrb[0].mxu0
        %v401 = vadd.f32 0.0, %v400
        %v402 = vpop.f32.mrb[0].mxu0
        %v403 = vpop.f32.mrb[0].mxu0
        %v404 = vpop.f32.mrb[0].mxu0
        %405 = vdwg.mxu0
        %v406 = vadd.f32 %v272, %v401
        %v407 = vld [vmem:[%s4] sm:$0x1]
        %v409 = vlaneseq
        %v410 = vshrl.u32 %v409, 7
        %v411 = vsub.s32 0, %v410
        %v412 = vrot.slane %v407, %v411
        %v414 = vadd.f32 %v406, %v412
        %415 = vst [vmem:[%s270] sm:$0xff] %v414
        %s416 = sand.u32 %s157, 1
        %s417 = scalar_lea.sflag [#allocation6], %s416
        %s418 = sand.u32 %s157, 1
        %s419 = smul.addr %s418, 8
        %s420 = scalar_lea.vmem [#allocation9], %s419
        // Predicated region
        $region49: #{tpu_custom_call.1} parent=39 // pred_check
          %p421 = pneg %p167
        $region50: #{tpu_custom_call.1} parent=39 // pred_check_branch
          %423 = sbr.rel (%p421) target = $region52
        $region51: #{tpu_custom_call.1} parent=39 // pred_region
          %s425 = ssub.s32 128, 128
          %426 = vsyncadd %s417, %s425
          %s427 = sadd.s32 %s30, %s29
          %s428 = smul.addr %s427, 128
          %s429 = scalar_lea.hbm %s5, %s428
          %s431 = sshll.u32 %s420, 4
          %s432 = int_to_ptr.vmem [resolvable:$true] %s431
          %434 = dma.vmem_to_hbm [thread:$0]  %s432, 128, %s429, %s417
        $region52: #{tpu_custom_call.1} parent=39 // pred_fallthru
          _
      $region40: #{tpu_custom_call.1} parent=5 // pred_fallthru
        _
      %p435 = scmp.le.s32.totalorder 2, %s20
      // Predicated region
      $region53: #{tpu_custom_call.1} parent=5 // pred_check
        %p436 = pneg %p435
      $region54: #{tpu_custom_call.1} parent=5 // pred_check_branch
        %438 = sbr.rel (%p436) target = $region56
      $region55: #{tpu_custom_call.1} parent=5 // pred_region
        %s439 = ssub.s32 %s20, 2
        // Predicated region
        $region57: #{tpu_custom_call.1} parent=55 // pred_check
          %p440 = pneg %p173
        $region58: #{tpu_custom_call.1} parent=55 // pred_check_branch
          %442 = sbr.rel (%p440) target = $region60
        $region59: #{tpu_custom_call.1} parent=55 // pred_region
          %s443 = sand.u32 %s158, 1
          %s444 = scalar_lea.sflag [#allocation6], %s443
          %s445 = sand.u32 %s158, 1
          %s446 = smul.addr %s445, 8
          %s447 = scalar_lea.vmem [#allocation9], %s446
          %448 = dma.done %s444, 128
        $region60: #{tpu_custom_call.1} parent=55 // pred_fallthru
          _
      $region56: #{tpu_custom_call.1} parent=5 // pred_fallthru
        _
    $region6: #{tpu_custom_call.1} parent=1 // loop_footer
      %s24 = sadd.s32 1, %s20
    $region7: #{tpu_custom_call.1} parent=1 // loop_footer_branch
      %19 = sbr.rel target = $region3
    $region8: #{tpu_custom_call.1} parent=1 // loop_exit
      _
    %449 = vsyncpa [#allocation5], 1
    %s450 = scalar_lea.sflag [#allocation5], 1
    %451 = vsyncpa %s450, 1
    %452 = vsyncpa [#allocation8], 1
    %453 = vsyncpa [#allocation6], 1
    %s454 = scalar_lea.sflag [#allocation6], 1
    %455 = vsyncpa %s454, 1

</llo_original>
